<compile_context>
chip_gen: v7x
topology: tpu7x:2x2x1
jax: 0.10.0
libtpu: 0.0.40
codegen_flags: <defaults>
</compile_context>

<pallas_src>
import functools

import jax
import jax.numpy as jnp
from jax import lax
from jax.experimental import pallas as pl
from jax.experimental.pallas import tpu as pltpu


SLOPE = 0.1   # leaky-relu negative slope ('lrelu'); max(h, s*h) valid for 0 < s < 1


def _round_up(n, m):
    return ((n + m - 1) // m) * m


# --------------------------------------------------------------------------
# Kernel
# --------------------------------------------------------------------------
def _laplace_mlp_kernel(*refs, n_layers, out_dim):
    """One row-tile of the fused (mean || logvar) MLP.

    refs = (x_ref, w_0..w_{L-1}, b_0..b_{L-1}, out_ref)
      x_ref:   [TB, d_in]            f32 input rows (row-padded only)
      w_l:     [in_l, out_l]         bf16 fused weights (natural sizes)
      b_l:     [1, out_l]            f32 fused biases
      out_ref: [TB, 2*out_dim]       lanes [0, out_dim)          -> mean
                                     lanes [out_dim, 2*out_dim)  -> var = exp(logvar)
    """
    x_ref = refs[0]
    w_refs = refs[1:1 + n_layers]
    b_refs = refs[1 + n_layers:1 + 2 * n_layers]
    out_ref = refs[1 + 2 * n_layers]

    h = x_ref[...]  # f32
    for l in range(n_layers):  # static Python loop; shapes are compile-time
        # bf16 x bf16 matmul, f32 accumulation; bias add stays in f32.
        h = jnp.dot(h.astype(jnp.bfloat16), w_refs[l][...],
                    preferred_element_type=jnp.float32) + b_refs[l][...]
        if l < n_layers - 1:
            # leaky-ReLU: max(h, slope*h) == leaky_relu for slope in (0, 1)
            h = jnp.maximum(h, SLOPE * h)

    # Epilogue: exp only on the logvar lanes; mean lanes pass through.
    # exp() runs on all lanes (EUP slot, overlaps the MXU).  The mean lanes may
    # produce inf there, but the element-wise select discards them -- do NOT
    # replace the where with arithmetic masking (mask*h + (1-mask)*exp(h)),
    # which would turn those infs into NaNs.
    lane_idx = lax.broadcasted_iota(jnp.int32, (1, h.shape[-1]), 1)
    out_ref[...] = jnp.where(lane_idx < out_dim, h, jnp.exp(h))


# --------------------------------------------------------------------------
# Parameter packing (fuse mean + logvar MLPs; weights -> bf16, natural sizes)
# --------------------------------------------------------------------------
def _block_diag(a, b):
    out = jnp.zeros((a.shape[0] + b.shape[0], a.shape[1] + b.shape[1]), a.dtype)
    out = out.at[: a.shape[0], : a.shape[1]].set(a)
    out = out.at[a.shape[0]:, a.shape[1]:].set(b)
    return out


def _pack_params(mean_params, logvar_params):
    """Fuse the two MLPs into per-layer (weight, bias) pairs.

    Layer 1:   [W1m | W1v]            (concat on the output axis)
    Layer k>1: blockdiag(Wkm, Wkv)    (keeps the two streams independent)
    Weights are cast to bf16; biases stay f32.
    """
    n_layers = len(mean_params) // 2
    w_list, b_list = [], []
    for l in range(n_layers):
        wm, bm = mean_params[2 * l], mean_params[2 * l + 1]
        wv, bv = logvar_params[2 * l], logvar_params[2 * l + 1]
        w = jnp.concatenate([wm, wv], axis=1) if l == 0 else _block_diag(wm, wv)
        b = jnp.concatenate([bm, bv], axis=1)
        w_list.append(w.astype(jnp.bfloat16))
        b_list.append(b.astype(jnp.float32))
    return w_list, b_list


# --------------------------------------------------------------------------
# Plain-JAX reference (matches the PyTorch forward) -- also the tiny-batch path
# --------------------------------------------------------------------------
def _mlp_apply(x, params):
    h = x
    n = len(params) // 2
    for i in range(n):
        h = h @ params[2 * i] + params[2 * i + 1]
        if i < n - 1:
            h = jnp.where(h > 0, h, SLOPE * h)
    return h


def reference_forward(x, mean_params, logvar_params):
    return _mlp_apply(x, mean_params), jnp.exp(_mlp_apply(x, logvar_params))


# --------------------------------------------------------------------------
# Wrapper
# --------------------------------------------------------------------------
def laplace_mlp_forward(x, mean_params, logvar_params, *, block_rows=1024,
                        small_batch_threshold=64):
    """x: [B, D_in] float32.  *_params: (w1, b1, ..., wL, bL) with
    w: [in, out], b: [1, out].  Returns (mean [B, D_out], var [B, D_out])."""
    B, d_in = x.shape
    out_dim = mean_params[-1].shape[-1]
    n_layers = len(mean_params) // 2
    fused_out = 2 * out_dim

    # Tiny batches: pallas_call fixed cost dwarfs the compute -> plain JAX.
    if B < small_batch_threshold:
        return reference_forward(x, mean_params, logvar_params)

    W_list, Bb_list = _pack_params(mean_params, logvar_params)

    # Row tile: multiple of 8, capped at block_rows, and sized so the grid has
    # at least 2 steps (engages v7x's second TC and the DMA/compute pipeline).
    min_steps = 2
    TB = max(8, min(block_rows, _round_up(pl.cdiv(B, min_steps), 8)))
    B_pad = max(_round_up(B, TB), min_steps * TB)
    x_p = x if B_pad == B else jnp.pad(x, ((0, B_pad - B), (0, 0)))

    grid = (B_pad // TB,)
    kernel = functools.partial(_laplace_mlp_kernel, n_layers=n_layers,
                               out_dim=out_dim)

    flops = sum(2 * B_pad * w.shape[0] * w.shape[1] for w in W_list)
    bytes_accessed = (
        4 * x_p.size
        + sum(2 * w.size for w in W_list)
        + sum(4 * b.size for b in Bb_list)
        + 4 * B_pad * fused_out
    )

    in_specs = (
        # x: row-tiled at its native feature width, pipelined across the batch.
        [pl.BlockSpec((TB, d_in), lambda i: (i, 0))]
        # fused weights/biases: full-array blocks, constant index_map -> stay
        # resident in VMEM across grid steps (total ~10s of KiB in bf16, so the
        # default double-buffering is harmless).
        + [pl.BlockSpec(w.shape, lambda i: (0, 0)) for w in W_list]
        + [pl.BlockSpec(b.shape, lambda i: (0, 0)) for b in Bb_list]
    )

    out = pl.pallas_call(
        kernel,
        out_shape=jax.ShapeDtypeStruct((B_pad, fused_out), jnp.float32),
        grid=grid,
        in_specs=in_specs,
        out_specs=pl.BlockSpec((TB, fused_out), lambda i: (i, 0)),
        compiler_params=pltpu.CompilerParams(
            dimension_semantics=("parallel",),  # shard batch tiles across TCs
        ),
        cost_estimate=pl.CostEstimate(
            flops=flops,
            transcendentals=B_pad * fused_out,
            bytes_accessed=bytes_accessed,
        ),
    )(x_p, *W_list, *Bb_list)

    mean = out[:B, :out_dim]
    var = out[:B, out_dim:fused_out]
    return mean, var


# --------------------------------------------------------------------------
# Init
# --------------------------------------------------------------------------
def init_mlp_params(key, input_dim, hidden_dim, output_dim, n_layers):
    """Synthetic init for an MLP with n_layers linear layers.
    Returns (w1, b1, ..., wn, bn) with w: [in, out], b: [1, out]."""
    dims = [input_dim] + [hidden_dim] * (n_layers - 1) + [output_dim]
    params = []
    for i in range(n_layers):
        key, kw, kb = jax.random.split(key, 3)
        bound = 1.0 / jnp.sqrt(dims[i])
        w = jax.random.uniform(kw, (dims[i], dims[i + 1]), jnp.float32, -bound, bound)
        b = jax.random.uniform(kb, (1, dims[i + 1]), jnp.float32, -bound, bound)
        params += [w, b]
    return tuple(params)


# TODO(synk): Laplace.sample / Laplace.log_pdf are not part of forward() and are
# left to plain JAX if needed.

if __name__ == "__main__":
    # LaplaceMLP(input_dim=16, output_dim=16, hidden_dim=32, n_layers=3,
    #            activation='lrelu', slope=0.1); B chosen large enough to
    #            exercise the Pallas path (grid of >= 2 row tiles).
    B, INPUT_DIM, HIDDEN_DIM, OUTPUT_DIM, N_LAYERS = 512, 16, 32, 16, 3

    key = jax.random.PRNGKey(0)
    kx, km, kv = jax.random.split(key, 3)

    x = jax.random.normal(kx, (B, INPUT_DIM), jnp.float32)
    mean_params = init_mlp_params(km, INPUT_DIM, HIDDEN_DIM, OUTPUT_DIM, N_LAYERS)
    logvar_params = init_mlp_params(kv, INPUT_DIM, HIDDEN_DIM, OUTPUT_DIM, N_LAYERS)

    mean_out, var_out = laplace_mlp_forward(x, mean_params, logvar_params)
    jax.block_until_ready((mean_out, var_out))

    ref_mean, ref_var = reference_forward(x, mean_params, logvar_params)
    # Tolerance loosened vs the f32 version: weights/matmul operands are bf16
    # (f32 accumulation), so ~1e-2-level deviations are expected.
    assert mean_out.shape == ref_mean.shape and var_out.shape == ref_var.shape
    assert jnp.allclose(mean_out, ref_mean, atol=3e-2, rtol=5e-2)
    assert jnp.allclose(var_out, ref_var, atol=3e-2, rtol=5e-2)

    print("KERNEL_OK")
</pallas_src>

<mosaic_0001>
module attributes {stable_mosaic.version = 11 : i64} {
  func.func @_laplace_mlp_kernel(%arg0: i32, %arg1: memref<256x16xf32, #tpu.memory_space<vmem>>, %arg2: memref<16x64xbf16, #tpu.memory_space<vmem>>, %arg3: memref<64x64xbf16, #tpu.memory_space<vmem>>, %arg4: memref<64x32xbf16, #tpu.memory_space<vmem>>, %arg5: memref<1x64xf32, #tpu.memory_space<vmem>>, %arg6: memref<1x64xf32, #tpu.memory_space<vmem>>, %arg7: memref<1x32xf32, #tpu.memory_space<vmem>>, %arg8: memref<256x32xf32, #tpu.memory_space<vmem>>) attributes {dimension_semantics = [#tpu.dimension_semantics<parallel>], iteration_bounds = array<i64: 2>, scalar_prefetch = 0 : i64, scratch_operands = 0 : i64, tpu.core_type = #tpu.core_type<tc>, window_params = [{transform_indices = @transform_0, window_bounds = array<i64: 256, 16>}, {pipeline_mode = #tpu.pipeline_mode<synchronous>, transform_indices = @transform_1, window_bounds = array<i64: 16, 64>}, {pipeline_mode = #tpu.pipeline_mode<synchronous>, transform_indices = @transform_2, window_bounds = array<i64: 64, 64>}, {pipeline_mode = #tpu.pipeline_mode<synchronous>, transform_indices = @transform_3, window_bounds = array<i64: 64, 32>}, {pipeline_mode = #tpu.pipeline_mode<synchronous>, transform_indices = @transform_4, window_bounds = array<i64: 1, 64>}, {pipeline_mode = #tpu.pipeline_mode<synchronous>, transform_indices = @transform_5, window_bounds = array<i64: 1, 64>}, {pipeline_mode = #tpu.pipeline_mode<synchronous>, transform_indices = @transform_6, window_bounds = array<i64: 1, 32>}, {transform_indices = @transform_7, window_bounds = array<i64: 256, 32>}]} {
    %c0 = arith.constant 0 : index
    %c0_0 = arith.constant 0 : index
    %0 = vector.load %arg1[%c0, %c0_0] : memref<256x16xf32, #tpu.memory_space<vmem>>, vector<256x16xf32>
    %1 = arith.truncf %0 : vector<256x16xf32> to vector<256x16xbf16>
    %c0_1 = arith.constant 0 : index
    %c0_2 = arith.constant 0 : index
    %2 = vector.load %arg2[%c0_1, %c0_2] : memref<16x64xbf16, #tpu.memory_space<vmem>>, vector<16x64xbf16>
    %cst = arith.constant dense<0.000000e+00> : vector<256x64xf32>
    %3 = tpu.matmul %1, %2, %cst {dimension_numbers = #tpu.dot_dimension_numbers<[1], [0], [0], [1], [0, 0, 1, 1], [], []>} : vector<256x16xbf16>, vector<16x64xbf16>, vector<256x64xf32> -> vector<256x64xf32>
    %c0_3 = arith.constant 0 : index
    %c0_4 = arith.constant 0 : index
    %4 = vector.load %arg5[%c0_3, %c0_4] : memref<1x64xf32, #tpu.memory_space<vmem>>, vector<1x64xf32>
    %5 = vector.broadcast %4 : vector<1x64xf32> to vector<256x64xf32>
    %6 = arith.addf %3, %5 : vector<256x64xf32>
    %cst_5 = arith.constant 1.000000e-01 : f32
    %7 = vector.broadcast %cst_5 : f32 to vector<256x64xf32>
    %8 = arith.mulf %7, %6 : vector<256x64xf32>
    %9 = arith.maximumf %6, %8 : vector<256x64xf32>
    %10 = arith.truncf %9 : vector<256x64xf32> to vector<256x64xbf16>
    %c0_6 = arith.constant 0 : index
    %c0_7 = arith.constant 0 : index
    %11 = vector.load %arg3[%c0_6, %c0_7] : memref<64x64xbf16, #tpu.memory_space<vmem>>, vector<64x64xbf16>
    %cst_8 = arith.constant dense<0.000000e+00> : vector<256x64xf32>
    %12 = tpu.matmul %10, %11, %cst_8 {dimension_numbers = #tpu.dot_dimension_numbers<[1], [0], [0], [1], [0, 0, 1, 1], [], []>} : vector<256x64xbf16>, vector<64x64xbf16>, vector<256x64xf32> -> vector<256x64xf32>
    %c0_9 = arith.constant 0 : index
    %c0_10 = arith.constant 0 : index
    %13 = vector.load %arg6[%c0_9, %c0_10] : memref<1x64xf32, #tpu.memory_space<vmem>>, vector<1x64xf32>
    %14 = vector.broadcast %13 : vector<1x64xf32> to vector<256x64xf32>
    %15 = arith.addf %12, %14 : vector<256x64xf32>
    %cst_11 = arith.constant 1.000000e-01 : f32
    %16 = vector.broadcast %cst_11 : f32 to vector<256x64xf32>
    %17 = arith.mulf %16, %15 : vector<256x64xf32>
    %18 = arith.maximumf %15, %17 : vector<256x64xf32>
    %19 = arith.truncf %18 : vector<256x64xf32> to vector<256x64xbf16>
    %c0_12 = arith.constant 0 : index
    %c0_13 = arith.constant 0 : index
    %20 = vector.load %arg4[%c0_12, %c0_13] : memref<64x32xbf16, #tpu.memory_space<vmem>>, vector<64x32xbf16>
    %cst_14 = arith.constant dense<0.000000e+00> : vector<256x32xf32>
    %21 = tpu.matmul %19, %20, %cst_14 {dimension_numbers = #tpu.dot_dimension_numbers<[1], [0], [0], [1], [0, 0, 1, 1], [], []>} : vector<256x64xbf16>, vector<64x32xbf16>, vector<256x32xf32> -> vector<256x32xf32>
    %c0_15 = arith.constant 0 : index
    %c0_16 = arith.constant 0 : index
    %22 = vector.load %arg7[%c0_15, %c0_16] : memref<1x32xf32, #tpu.memory_space<vmem>>, vector<1x32xf32>
    %23 = vector.broadcast %22 : vector<1x32xf32> to vector<256x32xf32>
    %24 = arith.addf %21, %23 : vector<256x32xf32>
    %25 = tpu.iota {dimensions = array<i32: 1>} : vector<1x32xi32>
    %c16_i32 = arith.constant 16 : i32
    %26 = vector.broadcast %c16_i32 : i32 to vector<1x32xi32>
    %27 = arith.cmpi slt, %25, %26 : vector<1x32xi32>
    %28 = math.exp %24 : vector<256x32xf32>
    %29 = vector.shape_cast %27 : vector<1x32xi1> to vector<1x32xi1>
    %30 = vector.broadcast %29 : vector<1x32xi1> to vector<256x32xi1>
    %31 = arith.select %30, %24, %28 : vector<256x32xi1>, vector<256x32xf32>
    %c0_17 = arith.constant 0 : index
    %c0_18 = arith.constant 0 : index
    %32 = vector.load %arg8[%c0_17, %c0_18] : memref<256x32xf32, #tpu.memory_space<vmem>>, vector<256x32xf32>
    tpu.vector_store %arg8[%c0_17, %c0_18], %31 {strides = array<i32>} : memref<256x32xf32, #tpu.memory_space<vmem>>, vector<256x32xf32>,
    return
  }
  func.func @transform_0(%arg0: i32) -> (i32, i32) {
    %c0_i32 = arith.constant 0 : i32
    %c0_i32_0 = arith.constant 0 : i32
    return %arg0, %c0_i32 : i32, i32
  }
  func.func @transform_1(%arg0: i32) -> (i32, i32) {
    %c0_i32 = arith.constant 0 : i32
    %c0_i32_0 = arith.constant 0 : i32
    %c0_i32_1 = arith.constant 0 : i32
    return %c0_i32, %c0_i32_0 : i32, i32
  }
  func.func @transform_2(%arg0: i32) -> (i32, i32) {
    %c0_i32 = arith.constant 0 : i32
    %c0_i32_0 = arith.constant 0 : i32
    %c0_i32_1 = arith.constant 0 : i32
    return %c0_i32, %c0_i32_0 : i32, i32
  }
  func.func @transform_3(%arg0: i32) -> (i32, i32) {
    %c0_i32 = arith.constant 0 : i32
    %c0_i32_0 = arith.constant 0 : i32
    %c0_i32_1 = arith.constant 0 : i32
    return %c0_i32, %c0_i32_0 : i32, i32
  }
  func.func @transform_4(%arg0: i32) -> (i32, i32) {
    %c0_i32 = arith.constant 0 : i32
    %c0_i32_0 = arith.constant 0 : i32
    %c0_i32_1 = arith.constant 0 : i32
    return %c0_i32, %c0_i32_0 : i32, i32
  }
  func.func @transform_5(%arg0: i32) -> (i32, i32) {
    %c0_i32 = arith.constant 0 : i32
    %c0_i32_0 = arith.constant 0 : i32
    %c0_i32_1 = arith.constant 0 : i32
    return %c0_i32, %c0_i32_0 : i32, i32
  }
  func.func @transform_6(%arg0: i32) -> (i32, i32) {
    %c0_i32 = arith.constant 0 : i32
    %c0_i32_0 = arith.constant 0 : i32
    %c0_i32_1 = arith.constant 0 : i32
    return %c0_i32, %c0_i32_0 : i32, i32
  }
  func.func @transform_7(%arg0: i32) -> (i32, i32) {
    %c0_i32 = arith.constant 0 : i32
    %c0_i32_0 = arith.constant 0 : i32
    return %arg0, %c0_i32 : i32, i32
  }
}

</mosaic_0001>

<llo_original>
// kernel: tpu_custom_call.1
$region0: #{tpu_custom_call.1}
  #allocation0 [shape = 'u32[]', space=smem, size = 0x4, offset = 0x4, fixed_abs, tag = 'smem constant byte address 0x4 - core index']
  #allocation1 [shape = 'u32[144,128]{1,0:T(1,128)}', space=vmem, size = 0x12000, scoped, tag = 'internal scratch']
  %s0 = inlined_call_operand.vmem [shape: f32[512,16], index: 0, kind: input, shape index: {}]
  %s1 = inlined_call_operand.vmem [shape: bf16[16,64], index: 1, kind: input, shape index: {}]
  %s2 = inlined_call_operand.vmem [shape: bf16[64,64], index: 2, kind: input, shape index: {}]
  %s3 = inlined_call_operand.vmem [shape: bf16[64,32], index: 3, kind: input, shape index: {}]
  %s4 = inlined_call_operand.vmem [shape: f32[1,64], index: 4, kind: input, shape index: {}]
  %s5 = inlined_call_operand.vmem [shape: f32[1,64], index: 5, kind: input, shape index: {}]
  %s6 = inlined_call_operand.vmem [shape: f32[1,32], index: 6, kind: input, shape index: {}]
  %s7 = inlined_call_operand.vmem [shape: f32[512,32], index: 7, kind: output, shape index: {}]
  %s8 = sld [smem:[#allocation0]]
  $region61: #{tpu_custom_call.1} parent=0
    _
  %s10 = ssub.s32 1, %s8
  %s11 = scalar_select 0, %s10, %s8
  loop: start=0, step=1, limit=4
  $region2: #{tpu_custom_call.1} parent=0 // loop_pre_header
    _
  $region3: #{tpu_custom_call.1} parent=0 // loop_header
    %s13 = sphi 0, %s17
    %p14 = scmp.ge.s32.totalorder %s13, 4
    %s23 = sphi 0, %s25
    %s26 = sphi 0, %s23
    %s27 = sphi 0, %s26
    %s43 = sphi 0, %s27
    %s47 = sphi 0, %s47
    %s49 = sphi 0, %s47
    %s50 = sphi 0, %s49
    %s64 = sphi 0, %s50
    %s68 = sphi 0, %s68
    %s70 = sphi 0, %s68
    %s71 = sphi 0, %s70
    %s85 = sphi 0, %s71
    %s89 = sphi 0, %s89
    %s91 = sphi 0, %s89
    %s92 = sphi 0, %s91
    %s106 = sphi 0, %s92
    %s110 = sphi 0, %s110
    %s112 = sphi 0, %s110
    %s113 = sphi 0, %s112
    %s127 = sphi 0, %s113
    %s131 = sphi 0, %s131
    %s133 = sphi 0, %s131
    %s134 = sphi 0, %s133
    %s148 = sphi 0, %s134
    %s152 = sphi 0, %s152
    %s154 = sphi 0, %s152
    %s155 = sphi 0, %s154
    %s169 = sphi 0, %s155
    %s175 = sphi 0, %s177
    %s178 = sphi 0, %s175
    %s179 = sphi 0, %s178
    %s195 = sphi 0, %s179
  $region4: #{tpu_custom_call.1} parent=0 // loop_header_branch
    %16 = sbr.rel (%p14) target = $region8
  $region5: #{tpu_custom_call.1} parent=0 // loop_body
    %s18 = ssub.s32 %s13, 1
    %s19 = ssub.s32 %s13, 2
    %s20 = sadd.s32 %s13, 1
    %s21 = ssub.s32 %s13, %s20
    %p22 = scmp.eq.s32.totalorder %s21, 0
    %s24 = sadd.s32 %s23, 1
    %s25 = scalar_select %p22, %s23, %s24
    %p28 = pneg %p22
    %p29 = scmp.eq.s32.totalorder %s13, 1
    %p30 = por %p28, %p29
    %p31 = scmp.ne.s32.totalorder %s23, %s26
    %p32 = scmp.eq.s32.totalorder %s13, 0
    %p33 = por %p31, %p32
    %p34 = scmp.ne.s32.totalorder %s23, %s26
    %p35 = scmp.eq.s32.totalorder %s18, 1
    %p36 = por %p34, %p35
    %p37 = scmp.ne.s32.totalorder %s26, %s27
    %p38 = scmp.eq.s32.totalorder %s18, 0
    %p39 = por %p37, %p38
    %p40 = scmp.ne.s32.totalorder %s26, %s27
    %p41 = scmp.eq.s32.totalorder %s19, 1
    %p42 = por %p40, %p41
    %p44 = scmp.ne.s32.totalorder %s27, %s43
    %p45 = scmp.eq.s32.totalorder %s19, 0
    %p46 = por %p44, %p45
    %s48 = sadd.s32 %s47, 1
    %p51 = scmp.eq.s32.totalorder %s13, 1
    %p52 = scmp.ne.s32.totalorder %s47, %s49
    %p53 = scmp.eq.s32.totalorder %s13, 0
    %p54 = por %p52, %p53
    %p55 = scmp.ne.s32.totalorder %s47, %s49
    %p56 = scmp.eq.s32.totalorder %s18, 1
    %p57 = por %p55, %p56
    %p58 = scmp.ne.s32.totalorder %s49, %s50
    %p59 = scmp.eq.s32.totalorder %s18, 0
    %p60 = por %p58, %p59
    %p61 = scmp.ne.s32.totalorder %s49, %s50
    %p62 = scmp.eq.s32.totalorder %s19, 1
    %p63 = por %p61, %p62
    %p65 = scmp.ne.s32.totalorder %s50, %s64
    %p66 = scmp.eq.s32.totalorder %s19, 0
    %p67 = por %p65, %p66
    %s69 = sadd.s32 %s68, 1
    %p72 = scmp.eq.s32.totalorder %s13, 1
    %p73 = scmp.ne.s32.totalorder %s68, %s70
    %p74 = scmp.eq.s32.totalorder %s13, 0
    %p75 = por %p73, %p74
    %p76 = scmp.ne.s32.totalorder %s68, %s70
    %p77 = scmp.eq.s32.totalorder %s18, 1
    %p78 = por %p76, %p77
    %p79 = scmp.ne.s32.totalorder %s70, %s71
    %p80 = scmp.eq.s32.totalorder %s18, 0
    %p81 = por %p79, %p80
    %p82 = scmp.ne.s32.totalorder %s70, %s71
    %p83 = scmp.eq.s32.totalorder %s19, 1
    %p84 = por %p82, %p83
    %p86 = scmp.ne.s32.totalorder %s71, %s85
    %p87 = scmp.eq.s32.totalorder %s19, 0
    %p88 = por %p86, %p87
    %s90 = sadd.s32 %s89, 1
    %p93 = scmp.eq.s32.totalorder %s13, 1
    %p94 = scmp.ne.s32.totalorder %s89, %s91
    %p95 = scmp.eq.s32.totalorder %s13, 0
    %p96 = por %p94, %p95
    %p97 = scmp.ne.s32.totalorder %s89, %s91
    %p98 = scmp.eq.s32.totalorder %s18, 1
    %p99 = por %p97, %p98
    %p100 = scmp.ne.s32.totalorder %s91, %s92
    %p101 = scmp.eq.s32.totalorder %s18, 0
    %p102 = por %p100, %p101
    %p103 = scmp.ne.s32.totalorder %s91, %s92
    %p104 = scmp.eq.s32.totalorder %s19, 1
    %p105 = por %p103, %p104
    %p107 = scmp.ne.s32.totalorder %s92, %s106
    %p108 = scmp.eq.s32.totalorder %s19, 0
    %p109 = por %p107, %p108
    %s111 = sadd.s32 %s110, 1
    %p114 = scmp.eq.s32.totalorder %s13, 1
    %p115 = scmp.ne.s32.totalorder %s110, %s112
    %p116 = scmp.eq.s32.totalorder %s13, 0
    %p117 = por %p115, %p116
    %p118 = scmp.ne.s32.totalorder %s110, %s112
    %p119 = scmp.eq.s32.totalorder %s18, 1
    %p120 = por %p118, %p119
    %p121 = scmp.ne.s32.totalorder %s112, %s113
    %p122 = scmp.eq.s32.totalorder %s18, 0
    %p123 = por %p121, %p122
    %p124 = scmp.ne.s32.totalorder %s112, %s113
    %p125 = scmp.eq.s32.totalorder %s19, 1
    %p126 = por %p124, %p125
    %p128 = scmp.ne.s32.totalorder %s113, %s127
    %p129 = scmp.eq.s32.totalorder %s19, 0
    %p130 = por %p128, %p129
    %s132 = sadd.s32 %s131, 1
    %p135 = scmp.eq.s32.totalorder %s13, 1
    %p136 = scmp.ne.s32.totalorder %s131, %s133
    %p137 = scmp.eq.s32.totalorder %s13, 0
    %p138 = por %p136, %p137
    %p139 = scmp.ne.s32.totalorder %s131, %s133
    %p140 = scmp.eq.s32.totalorder %s18, 1
    %p141 = por %p139, %p140
    %p142 = scmp.ne.s32.totalorder %s133, %s134
    %p143 = scmp.eq.s32.totalorder %s18, 0
    %p144 = por %p142, %p143
    %p145 = scmp.ne.s32.totalorder %s133, %s134
    %p146 = scmp.eq.s32.totalorder %s19, 1
    %p147 = por %p145, %p146
    %p149 = scmp.ne.s32.totalorder %s134, %s148
    %p150 = scmp.eq.s32.totalorder %s19, 0
    %p151 = por %p149, %p150
    %s153 = sadd.s32 %s152, 1
    %p156 = scmp.eq.s32.totalorder %s13, 1
    %p157 = scmp.ne.s32.totalorder %s152, %s154
    %p158 = scmp.eq.s32.totalorder %s13, 0
    %p159 = por %p157, %p158
    %p160 = scmp.ne.s32.totalorder %s152, %s154
    %p161 = scmp.eq.s32.totalorder %s18, 1
    %p162 = por %p160, %p161
    %p163 = scmp.ne.s32.totalorder %s154, %s155
    %p164 = scmp.eq.s32.totalorder %s18, 0
    %p165 = por %p163, %p164
    %p166 = scmp.ne.s32.totalorder %s154, %s155
    %p167 = scmp.eq.s32.totalorder %s19, 1
    %p168 = por %p166, %p167
    %p170 = scmp.ne.s32.totalorder %s155, %s169
    %p171 = scmp.eq.s32.totalorder %s19, 0
    %p172 = por %p170, %p171
    %s173 = ssub.s32 %s13, %s20
    %p174 = scmp.eq.s32.totalorder %s173, 0
    %s176 = sadd.s32 %s175, 1
    %s177 = scalar_select %p174, %s175, %s176
    %p180 = pneg %p174
    %p181 = scmp.eq.s32.totalorder %s13, 1
    %p182 = por %p180, %p181
    %p183 = scmp.ne.s32.totalorder %s175, %s178
    %p184 = scmp.eq.s32.totalorder %s13, 0
    %p185 = por %p183, %p184
    %p186 = scmp.ne.s32.totalorder %s175, %s178
    %p187 = scmp.eq.s32.totalorder %s18, 1
    %p188 = por %p186, %p187
    %p189 = scmp.ne.s32.totalorder %s178, %s179
    %p190 = scmp.eq.s32.totalorder %s18, 0
    %p191 = por %p189, %p190
    %p192 = scmp.ne.s32.totalorder %s178, %s179
    %p193 = scmp.eq.s32.totalorder %s19, 1
    %p194 = por %p192, %p193
    %p196 = scmp.ne.s32.totalorder %s179, %s195
    %p197 = scmp.eq.s32.totalorder %s19, 0
    %p198 = por %p196, %p197
    %p199 = scmp.le.s32.totalorder 1, %s13
    %p200 = scmp.lt.s32.totalorder %s13, 3
    %p201 = pnand %p199, %p200
    %p202 = pneg %p201
    // Predicated region
    $region9: #{tpu_custom_call.1} parent=5 // pred_check
      _
    $region10: #{tpu_custom_call.1} parent=5 // pred_check_branch
      %204 = sbr.rel (%p201) target = $region12
    $region11: #{tpu_custom_call.1} parent=5 // pred_region
      %s205 = ssub.s32 %s13, 1
      // Predicated region
      $region13: #{tpu_custom_call.1} parent=11 // pred_check
        %p206 = pneg %p60
      $region14: #{tpu_custom_call.1} parent=11 // pred_check_branch
        %208 = sbr.rel (%p206) target = $region16
      $region15: #{tpu_custom_call.1} parent=11 // pred_region
        _
      $region16: #{tpu_custom_call.1} parent=11 // pred_fallthru
        _
      // Predicated region
      $region17: #{tpu_custom_call.1} parent=11 // pred_check
        %p209 = pneg %p81
      $region18: #{tpu_custom_call.1} parent=11 // pred_check_branch
        %211 = sbr.rel (%p209) target = $region20
      $region19: #{tpu_custom_call.1} parent=11 // pred_region
        _
      $region20: #{tpu_custom_call.1} parent=11 // pred_fallthru
        _
      // Predicated region
      $region21: #{tpu_custom_call.1} parent=11 // pred_check
        %p212 = pneg %p102
      $region22: #{tpu_custom_call.1} parent=11 // pred_check_branch
        %214 = sbr.rel (%p212) target = $region24
      $region23: #{tpu_custom_call.1} parent=11 // pred_region
        _
      $region24: #{tpu_custom_call.1} parent=11 // pred_fallthru
        _
      // Predicated region
      $region25: #{tpu_custom_call.1} parent=11 // pred_check
        %p215 = pneg %p123
      $region26: #{tpu_custom_call.1} parent=11 // pred_check_branch
        %217 = sbr.rel (%p215) target = $region28
      $region27: #{tpu_custom_call.1} parent=11 // pred_region
        _
      $region28: #{tpu_custom_call.1} parent=11 // pred_fallthru
        _
      // Predicated region
      $region29: #{tpu_custom_call.1} parent=11 // pred_check
        %p218 = pneg %p144
      $region30: #{tpu_custom_call.1} parent=11 // pred_check_branch
        %220 = sbr.rel (%p218) target = $region32
      $region31: #{tpu_custom_call.1} parent=11 // pred_region
        _
      $region32: #{tpu_custom_call.1} parent=11 // pred_fallthru
        _
      // Predicated region
      $region33: #{tpu_custom_call.1} parent=11 // pred_check
        %p221 = pneg %p165
      $region34: #{tpu_custom_call.1} parent=11 // pred_check_branch
        %223 = sbr.rel (%p221) target = $region36
      $region35: #{tpu_custom_call.1} parent=11 // pred_region
        _
      $region36: #{tpu_custom_call.1} parent=11 // pred_fallthru
        _
    $region12: #{tpu_custom_call.1} parent=5 // pred_fallthru
      _
    %p224 = scmp.lt.s32.totalorder %s13, 2
    // Predicated region
    $region37: #{tpu_custom_call.1} parent=5 // pred_check
      %p225 = pneg %p224
    $region38: #{tpu_custom_call.1} parent=5 // pred_check_branch
      %227 = sbr.rel (%p225) target = $region40
    $region39: #{tpu_custom_call.1} parent=5 // pred_region
      // Predicated region
      $region41: #{tpu_custom_call.1} parent=39 // pred_check
        %p228 = pneg %p33
      $region42: #{tpu_custom_call.1} parent=39 // pred_check_branch
        %230 = sbr.rel (%p228) target = $region44
      $region43: #{tpu_custom_call.1} parent=39 // pred_region
        %s231 = smul.u32 32, %s13
        %p232 = scmp.lt.s32.totalorder %s231, 63
        %s233 = scalar_select %p232, %s231, 63
        %s234 = smul.addr %s233, 8
        %s235 = scalar_lea.vmem %s0, %s234
        %s236 = smul.u32 32, %s13
      $region44: #{tpu_custom_call.1} parent=39 // pred_fallthru
        _
    $region40: #{tpu_custom_call.1} parent=5 // pred_fallthru
      _
    %p237 = scmp.le.s32.totalorder 1, %s13
    %p238 = scmp.lt.s32.totalorder %s13, 3
    %p239 = pnand %p237, %p238
    %p240 = pneg %p239
    // Predicated region
    $region45: #{tpu_custom_call.1} parent=5 // pred_check
      _
    $region46: #{tpu_custom_call.1} parent=5 // pred_check_branch
      %242 = sbr.rel (%p239) target = $region48
    $region47: #{tpu_custom_call.1} parent=5 // pred_region
      %s243 = ssub.s32 %s13, 1
      %s244 = smul.u32 32, %s18
      %p245 = scmp.lt.s32.totalorder %s244, 63
      %s246 = scalar_select %p245, %s244, 63
      %s247 = smul.addr %s246, 8
      %s248 = scalar_lea.vmem %s0, %s247
      %p249 = pneg %p39
      %p250 = pneg %p36
      %p251 = pneg %p60
      %p252 = pneg %p57
      %p253 = pneg %p81
      %p254 = pneg %p78
      %p255 = pneg %p102
      %p256 = pneg %p99
      %p257 = pneg %p123
      %p258 = pneg %p120
      %p259 = pneg %p144
      %p260 = pneg %p141
      %p261 = pneg %p165
      %p262 = pneg %p162
      %p263 = pneg %p191
      %p264 = pneg %p188
      %s265 = smul.u32 32, %s18
      %p266 = scmp.lt.s32.totalorder %s265, 63
      %s267 = scalar_select %p266, %s265, 63
      %s268 = smul.addr %s267, 8
      %s269 = scalar_lea.vmem %s7, %s268
      %s270 = smul.u32 32, %s18
      %p271 = scmp.lt.s32.totalorder %s270, 63
      %s272 = scalar_select %p271, %s270, 63
      %s273 = smul.addr %s272, 8
      %s274 = scalar_lea.vmem %s0, %s273
      %s275 = smul.u32 32, %s18
      %s276 = smul.u32 32, %s18
      %p277 = scmp.lt.s32.totalorder %s276, 63
      %s278 = scalar_select %p277, %s276, 63
      %s279 = smul.addr %s278, 8
      %s280 = scalar_lea.vmem %s7, %s279
      %s281 = smul.u32 32, %s18
      %v283 = vld [vmem:[%s274] sm:$0xff]
      %v284 = vld [vmem:[%s274 + $0x8] sm:$0xff]
      %v285 = vld [vmem:[%s274 + $0x10] sm:$0xff]
      %v286 = vld [vmem:[%s274 + $0x18] sm:$0xff]
      %v287 = vld [vmem:[%s274 + $0x20] sm:$0xff]
      %v288 = vld [vmem:[%s274 + $0x28] sm:$0xff]
      %v289 = vld [vmem:[%s274 + $0x30] sm:$0xff]
      %v290 = vld [vmem:[%s274 + $0x38] sm:$0xff]
      %v291 = vld [vmem:[%s274 + $0x40] sm:$0xff]
      %v292 = vld [vmem:[%s274 + $0x48] sm:$0xff]
      %v293 = vld [vmem:[%s274 + $0x50] sm:$0xff]
      %v294 = vld [vmem:[%s274 + $0x58] sm:$0xff]
      %v295 = vld [vmem:[%s274 + $0x60] sm:$0xff]
      %v296 = vld [vmem:[%s274 + $0x68] sm:$0xff]
      %v297 = vld [vmem:[%s274 + $0x70] sm:$0xff]
      %v298 = vld [vmem:[%s274 + $0x78] sm:$0xff]
      %v299 = vld [vmem:[%s274 + $0x80] sm:$0xff]
      %v300 = vld [vmem:[%s274 + $0x88] sm:$0xff]
      %v301 = vld [vmem:[%s274 + $0x90] sm:$0xff]
      %v302 = vld [vmem:[%s274 + $0x98] sm:$0xff]
      %v303 = vld [vmem:[%s274 + $0xa0] sm:$0xff]
      %v304 = vld [vmem:[%s274 + $0xa8] sm:$0xff]
      %v305 = vld [vmem:[%s274 + $0xb0] sm:$0xff]
      %v306 = vld [vmem:[%s274 + $0xb8] sm:$0xff]
      %v307 = vld [vmem:[%s274 + $0xc0] sm:$0xff]
      %v308 = vld [vmem:[%s274 + $0xc8] sm:$0xff]
      %v309 = vld [vmem:[%s274 + $0xd0] sm:$0xff]
      %v310 = vld [vmem:[%s274 + $0xd8] sm:$0xff]
      %v311 = vld [vmem:[%s274 + $0xe0] sm:$0xff]
      %v312 = vld [vmem:[%s274 + $0xe8] sm:$0xff]
      %v313 = vld [vmem:[%s274 + $0xf0] sm:$0xff]
      %v314 = vld [vmem:[%s274 + $0xf8] sm:$0xff]
      %v315 = vpack.c.bf16 %v284, %v283
      %v316 = vpack.c.bf16 %v286, %v285
      %v317 = vpack.c.bf16 %v288, %v287
      %v318 = vpack.c.bf16 %v290, %v289
      %v319 = vpack.c.bf16 %v292, %v291
      %v320 = vpack.c.bf16 %v294, %v293
      %v321 = vpack.c.bf16 %v296, %v295
      %v322 = vpack.c.bf16 %v298, %v297
      %v323 = vpack.c.bf16 %v300, %v299
      %v324 = vpack.c.bf16 %v302, %v301
      %v325 = vpack.c.bf16 %v304, %v303
      %v326 = vpack.c.bf16 %v306, %v305
      %v327 = vpack.c.bf16 %v308, %v307
      %v328 = vpack.c.bf16 %v310, %v309
      %v329 = vpack.c.bf16 %v312, %v311
      %v330 = vpack.c.bf16 %v314, %v313
      %v331 = vld [vmem:[%s1] sm:$0xf]
      %v332 = vld [vmem:[%s1 + $0x4] sm:$0xf]
      %v333 = vld [vmem:[%s4] sm:$0x1]
      %v335 = vlaneseq
      %v336 = vshrl.u32 %v335, 7
      %v337 = vsub.s32 0, %v336
      %v338 = vrot.slane %v333, %v337
      %v342 = vunpack.c.l.b16 %v331
      %v343 = vunpack.c.l.b16 %v332
      %v344 = vpack.c.b16 %v343, %v342
      %vm346 = vcmask 130048
      %v348 = vsel %vm346, %v315, 0
      %v351 = vsel %vm346, %v316, 0
      %v354 = vsel %vm346, %v317, 0
      %v357 = vsel %vm346, %v318, 0
      %v360 = vsel %vm346, %v319, 0
      %v363 = vsel %vm346, %v320, 0
      %v366 = vsel %vm346, %v321, 0
      %v369 = vsel %vm346, %v322, 0
      %v372 = vsel %vm346, %v323, 0
      %v375 = vsel %vm346, %v324, 0
      %v378 = vsel %vm346, %v325, 0
      %v381 = vsel %vm346, %v326, 0
      %v384 = vsel %vm346, %v327, 0
      %v387 = vsel %vm346, %v328, 0
      %v390 = vsel %vm346, %v329, 0
      %v393 = vsel %vm346, %v330, 0
      %395 = vmatprep.subr.bf16.mxu0 0
      %396 = vmatpush1.bf16.msra.mxu0 %v344
      %397 = vmatprep.subr.bf16.mxu0 0
      %398 = vmatpush1.bf16.msra.mxu0 0
      %399 = vmatprep.subr.bf16.mxu0 0
      %400 = vmatpush1.bf16.msra.mxu0 0
      %401 = vmatprep.subr.bf16.mxu0 0
      %402 = vmatpush1.bf16.msra.mxu0 0
      %403 = vmatprep.subr.bf16.mxu0 0
      %404 = vmatpush1.bf16.msra.mxu0 0
      %405 = vmatprep.subr.bf16.mxu0 0
      %406 = vmatpush1.bf16.msra.mxu0 0
      %407 = vmatprep.subr.bf16.mxu0 0
      %408 = vmatpush1.bf16.msra.mxu0 0
      %409 = vmatprep.subr.bf16.mxu0 0
      %410 = vmatpush1.bf16.msra.mxu0 0
      %411 = vmatprep.subr.bf16.mxu0 0
      %412 = vmatpush1.bf16.msra.mxu0 0
      %413 = vmatprep.subr.bf16.mxu0 0
      %414 = vmatpush1.bf16.msra.mxu0 0
      %415 = vmatprep.subr.bf16.mxu0 0
      %416 = vmatpush1.bf16.msra.mxu0 0
      %417 = vmatprep.subr.bf16.mxu0 0
      %418 = vmatpush1.bf16.msra.mxu0 0
      %419 = vmatprep.subr.bf16.mxu0 0
      %420 = vmatpush1.bf16.msra.mxu0 0
      %421 = vmatprep.subr.bf16.mxu0 0
      %422 = vmatpush1.bf16.msra.mxu0 0
      %423 = vmatprep.subr.bf16.mxu0 0
      %424 = vmatpush1.bf16.msra.mxu0 0
      %425 = vmatprep.subr.bf16.mxu0 0
      %426 = vmatpush1.bf16.msra.mxu0 0
      %427 = vmatprep.mubr.bf16.mxu0 0
      %428 = vmatmul.mubr.bf16.gmra.mrb[0].mxu0 %v348
      %v429 = vpop.f32.mrb[0].mxu0
      %v430 = vadd.f32 %v338, %v429
      %v431 = vpop.f32.mrb[0].mxu0
      %v432 = vpop.f32.mrb[0].mxu0
      %v433 = vadd.f32 %v338, %v432
      %v434 = vpop.f32.mrb[0].mxu0
      %435 = vmatprep.mubr.bf16.mxu0 0
      %436 = vmatmul.mubr.bf16.gmra.mrb[0].mxu0 %v351
      %v437 = vpop.f32.mrb[0].mxu0
      %v438 = vadd.f32 %v338, %v437
      %v439 = vpop.f32.mrb[0].mxu0
      %v440 = vpop.f32.mrb[0].mxu0
      %v441 = vadd.f32 %v338, %v440
      %v442 = vpop.f32.mrb[0].mxu0
      %443 = vmatprep.mubr.bf16.mxu0 0
      %444 = vmatmul.mubr.bf16.gmra.mrb[0].mxu0 %v354
      %v445 = vpop.f32.mrb[0].mxu0
      %v446 = vadd.f32 %v338, %v445
      %v447 = vpop.f32.mrb[0].mxu0
      %v448 = vpop.f32.mrb[0].mxu0
      %v449 = vadd.f32 %v338, %v448
      %v450 = vpop.f32.mrb[0].mxu0
      %451 = vmatprep.mubr.bf16.mxu0 0
      %452 = vmatmul.mubr.bf16.gmra.mrb[0].mxu0 %v357
      %v453 = vpop.f32.mrb[0].mxu0
      %v454 = vadd.f32 %v338, %v453
      %v455 = vpop.f32.mrb[0].mxu0
      %v456 = vpop.f32.mrb[0].mxu0
      %v457 = vadd.f32 %v338, %v456
      %v458 = vpop.f32.mrb[0].mxu0
      %459 = vmatprep.mubr.bf16.mxu0 0
      %460 = vmatmul.mubr.bf16.gmra.mrb[0].mxu0 %v360
      %v461 = vpop.f32.mrb[0].mxu0
      %v462 = vadd.f32 %v338, %v461
      %v463 = vpop.f32.mrb[0].mxu0
      %v464 = vpop.f32.mrb[0].mxu0
      %v465 = vadd.f32 %v338, %v464
      %v466 = vpop.f32.mrb[0].mxu0
      %467 = vmatprep.mubr.bf16.mxu0 0
      %468 = vmatmul.mubr.bf16.gmra.mrb[0].mxu0 %v363
      %v469 = vpop.f32.mrb[0].mxu0
      %v470 = vadd.f32 %v338, %v469
      %v471 = vpop.f32.mrb[0].mxu0
      %v472 = vpop.f32.mrb[0].mxu0
      %v473 = vadd.f32 %v338, %v472
      %v474 = vpop.f32.mrb[0].mxu0
      %475 = vmatprep.mubr.bf16.mxu0 0
      %476 = vmatmul.mubr.bf16.gmra.mrb[0].mxu0 %v366
      %v477 = vpop.f32.mrb[0].mxu0
      %v478 = vadd.f32 %v338, %v477
      %v479 = vpop.f32.mrb[0].mxu0
      %v480 = vpop.f32.mrb[0].mxu0
      %v481 = vadd.f32 %v338, %v480
      %v482 = vpop.f32.mrb[0].mxu0
      %483 = vmatprep.mubr.bf16.mxu0 0
      %484 = vmatmul.mubr.bf16.gmra.mrb[0].mxu0 %v369
      %v485 = vpop.f32.mrb[0].mxu0
      %v486 = vadd.f32 %v338, %v485
      %v487 = vpop.f32.mrb[0].mxu0
      %v488 = vpop.f32.mrb[0].mxu0
      %v489 = vadd.f32 %v338, %v488
      %v490 = vpop.f32.mrb[0].mxu0
      %491 = vmatprep.mubr.bf16.mxu0 0
      %492 = vmatmul.mubr.bf16.gmra.mrb[0].mxu0 %v372
      %v493 = vpop.f32.mrb[0].mxu0
      %v494 = vadd.f32 %v338, %v493
      %v495 = vpop.f32.mrb[0].mxu0
      %v496 = vpop.f32.mrb[0].mxu0
      %v497 = vadd.f32 %v338, %v496
      %v498 = vpop.f32.mrb[0].mxu0
      %499 = vmatprep.mubr.bf16.mxu0 0
      %500 = vmatmul.mubr.bf16.gmra.mrb[0].mxu0 %v375
      %v501 = vpop.f32.mrb[0].mxu0
      %v502 = vadd.f32 %v338, %v501
      %v503 = vpop.f32.mrb[0].mxu0
      %v504 = vpop.f32.mrb[0].mxu0
      %v505 = vadd.f32 %v338, %v504
      %v506 = vpop.f32.mrb[0].mxu0
      %507 = vmatprep.mubr.bf16.mxu0 0
      %508 = vmatmul.mubr.bf16.gmra.mrb[0].mxu0 %v378
      %v509 = vpop.f32.mrb[0].mxu0
      %v510 = vadd.f32 %v338, %v509
      %v511 = vpop.f32.mrb[0].mxu0
      %v512 = vpop.f32.mrb[0].mxu0
      %v513 = vadd.f32 %v338, %v512
      %v514 = vpop.f32.mrb[0].mxu0
      %515 = vmatprep.mubr.bf16.mxu0 0
      %516 = vmatmul.mubr.bf16.gmra.mrb[0].mxu0 %v381
      %v517 = vpop.f32.mrb[0].mxu0
      %v518 = vadd.f32 %v338, %v517
      %v519 = vpop.f32.mrb[0].mxu0
      %v520 = vpop.f32.mrb[0].mxu0
      %v521 = vadd.f32 %v338, %v520
      %v522 = vpop.f32.mrb[0].mxu0
      %523 = vmatprep.mubr.bf16.mxu0 0
      %524 = vmatmul.mubr.bf16.gmra.mrb[0].mxu0 %v384
      %v525 = vpop.f32.mrb[0].mxu0
      %v526 = vadd.f32 %v338, %v525
      %v527 = vpop.f32.mrb[0].mxu0
      %v528 = vpop.f32.mrb[0].mxu0
      %v529 = vadd.f32 %v338, %v528
      %v530 = vpop.f32.mrb[0].mxu0
      %531 = vmatprep.mubr.bf16.mxu0 0
      %532 = vmatmul.mubr.bf16.gmra.mrb[0].mxu0 %v387
      %v533 = vpop.f32.mrb[0].mxu0
      %v534 = vadd.f32 %v338, %v533
      %v535 = vpop.f32.mrb[0].mxu0
      %v536 = vpop.f32.mrb[0].mxu0
      %v537 = vadd.f32 %v338, %v536
      %v538 = vpop.f32.mrb[0].mxu0
      %539 = vmatprep.mubr.bf16.mxu0 0
      %540 = vmatmul.mubr.bf16.gmra.mrb[0].mxu0 %v390
      %v541 = vpop.f32.mrb[0].mxu0
      %v542 = vadd.f32 %v338, %v541
      %v543 = vpop.f32.mrb[0].mxu0
      %v544 = vpop.f32.mrb[0].mxu0
      %v545 = vadd.f32 %v338, %v544
      %v546 = vpop.f32.mrb[0].mxu0
      %547 = vmatprep.mubr.bf16.mxu0 0
      %548 = vmatmul.mubr.bf16.gmra.mrb[0].mxu0 %v393
      %v549 = vpop.f32.mrb[0].mxu0
      %v550 = vadd.f32 %v338, %v549
      %v551 = vpop.f32.mrb[0].mxu0
      %v552 = vpop.f32.mrb[0].mxu0
      %v553 = vadd.f32 %v338, %v552
      %v554 = vpop.f32.mrb[0].mxu0
      %555 = vdwg.mxu0
      %v556 = vmul.f32 %v430, 0.1
      %v557 = vmul.f32 %v433, 0.1
      %v558 = vmul.f32 %v438, 0.1
      %v559 = vmul.f32 %v441, 0.1
      %v560 = vmul.f32 %v446, 0.1
      %v561 = vmul.f32 %v449, 0.1
      %v562 = vmul.f32 %v454, 0.1
      %v563 = vmul.f32 %v457, 0.1
      %v564 = vmul.f32 %v462, 0.1
      %v565 = vmul.f32 %v465, 0.1
      %v566 = vmul.f32 %v470, 0.1
      %v567 = vmul.f32 %v473, 0.1
      %v568 = vmul.f32 %v478, 0.1
      %v569 = vmul.f32 %v481, 0.1
      %v570 = vmul.f32 %v486, 0.1
      %v571 = vmul.f32 %v489, 0.1
      %v572 = vmul.f32 %v494, 0.1
      %v573 = vmul.f32 %v497, 0.1
      %v574 = vmul.f32 %v502, 0.1
      %v575 = vmul.f32 %v505, 0.1
      %v576 = vmul.f32 %v510, 0.1
      %v577 = vmul.f32 %v513, 0.1
      %v578 = vmul.f32 %v518, 0.1
      %v579 = vmul.f32 %v521, 0.1
      %v580 = vmul.f32 %v526, 0.1
      %v581 = vmul.f32 %v529, 0.1
      %v582 = vmul.f32 %v534, 0.1
      %v583 = vmul.f32 %v537, 0.1
      %v584 = vmul.f32 %v542, 0.1
      %v585 = vmul.f32 %v545, 0.1
      %v586 = vmul.f32 %v550, 0.1
      %v587 = vmul.f32 %v553, 0.1
      %v588 = vmax.f32 %v430, %v556
      %v589 = vmax.f32 %v433, %v557
      %v590 = vmax.f32 %v438, %v558
      %v591 = vmax.f32 %v441, %v559
      %v592 = vmax.f32 %v446, %v560
      %v593 = vmax.f32 %v449, %v561
      %v594 = vmax.f32 %v454, %v562
      %v595 = vmax.f32 %v457, %v563
      %v596 = vmax.f32 %v462, %v564
      %v597 = vmax.f32 %v465, %v565
      %v598 = vmax.f32 %v470, %v566
      %v599 = vmax.f32 %v473, %v567
      %v600 = vmax.f32 %v478, %v568
      %v601 = vmax.f32 %v481, %v569
      %v602 = vmax.f32 %v486, %v570
      %v603 = vmax.f32 %v489, %v571
      %v604 = vmax.f32 %v494, %v572
      %v605 = vmax.f32 %v497, %v573
      %v606 = vmax.f32 %v502, %v574
      %v607 = vmax.f32 %v505, %v575
      %v608 = vmax.f32 %v510, %v576
      %v609 = vmax.f32 %v513, %v577
      %v610 = vmax.f32 %v518, %v578
      %v611 = vmax.f32 %v521, %v579
      %v612 = vmax.f32 %v526, %v580
      %v613 = vmax.f32 %v529, %v581
      %v614 = vmax.f32 %v534, %v582
      %v615 = vmax.f32 %v537, %v583
      %v616 = vmax.f32 %v542, %v584
      %v617 = vmax.f32 %v545, %v585
      %v618 = vmax.f32 %v550, %v586
      %v619 = vmax.f32 %v553, %v587
      %v620 = vpack.c.bf16 %v589, %v588
      %v621 = vpack.c.bf16 %v591, %v590
      %v622 = vpack.c.bf16 %v593, %v592
      %v623 = vpack.c.bf16 %v595, %v594
      %v624 = vpack.c.bf16 %v597, %v596
      %v625 = vpack.c.bf16 %v599, %v598
      %v626 = vpack.c.bf16 %v601, %v600
      %v627 = vpack.c.bf16 %v603, %v602
      %v628 = vpack.c.bf16 %v605, %v604
      %v629 = vpack.c.bf16 %v607, %v606
      %v630 = vpack.c.bf16 %v609, %v608
      %v631 = vpack.c.bf16 %v611, %v610
      %v632 = vpack.c.bf16 %v613, %v612
      %v633 = vpack.c.bf16 %v615, %v614
      %v634 = vpack.c.bf16 %v617, %v616
      %v635 = vpack.c.bf16 %v619, %v618
      %v636 = vld [vmem:[%s2] sm:$0xf]
      %v637 = vld [vmem:[%s2 + $0x4] sm:$0xf]
      %v638 = vld [vmem:[%s2 + $0x8] sm:$0xf]
      %v639 = vld [vmem:[%s2 + $0xc] sm:$0xf]
      %v640 = vld [vmem:[%s2 + $0x10] sm:$0xf]
      %v641 = vld [vmem:[%s2 + $0x14] sm:$0xf]
      %v642 = vld [vmem:[%s2 + $0x18] sm:$0xf]
      %v643 = vld [vmem:[%s2 + $0x1c] sm:$0xf]
      %v644 = vld [vmem:[%s5] sm:$0x1]
      %v646 = vlaneseq
      %v647 = vshrl.u32 %v646, 7
      %v648 = vsub.s32 0, %v647
      %v649 = vrot.slane %v644, %v648
      %v659 = vunpack.c.l.b16 %v636
      %v660 = vunpack.c.l.b16 %v637
      %v661 = vunpack.c.l.b16 %v638
      %v662 = vunpack.c.l.b16 %v639
      %v663 = vunpack.c.l.b16 %v640
      %v664 = vunpack.c.l.b16 %v641
      %v665 = vunpack.c.l.b16 %v642
      %v666 = vunpack.c.l.b16 %v643
      %v667 = vpack.c.b16 %v660, %v659
      %v668 = vpack.c.b16 %v662, %v661
      %v669 = vpack.c.b16 %v664, %v663
      %v670 = vpack.c.b16 %v666, %v665
      %vm675 = vcmask 523264
      %v677 = vsel %vm675, %v620, 0
      %v680 = vsel %vm675, %v621, 0
      %v683 = vsel %vm675, %v622, 0
      %v686 = vsel %vm675, %v623, 0
      %v689 = vsel %vm675, %v624, 0
      %v692 = vsel %vm675, %v625, 0
      %v695 = vsel %vm675, %v626, 0
      %v698 = vsel %vm675, %v627, 0
      %v701 = vsel %vm675, %v628, 0
      %v704 = vsel %vm675, %v629, 0
      %v707 = vsel %vm675, %v630, 0
      %v710 = vsel %vm675, %v631, 0
      %v713 = vsel %vm675, %v632, 0
      %v716 = vsel %vm675, %v633, 0
      %v719 = vsel %vm675, %v634, 0
      %v722 = vsel %vm675, %v635, 0
      %724 = vmatprep.subr.bf16.mxu0 0
      %725 = vmatpush1.bf16.msra.mxu0 %v667
      %726 = vmatprep.subr.bf16.mxu0 0
      %727 = vmatpush1.bf16.msra.mxu0 %v668
      %728 = vmatprep.subr.bf16.mxu0 0
      %729 = vmatpush1.bf16.msra.mxu0 %v669
      %730 = vmatprep.subr.bf16.mxu0 0
      %731 = vmatpush1.bf16.msra.mxu0 %v670
      %732 = vmatprep.subr.bf16.mxu0 0
      %733 = vmatpush1.bf16.msra.mxu0 0
      %734 = vmatprep.subr.bf16.mxu0 0
      %735 = vmatpush1.bf16.msra.mxu0 0
      %736 = vmatprep.subr.bf16.mxu0 0
      %737 = vmatpush1.bf16.msra.mxu0 0
      %738 = vmatprep.subr.bf16.mxu0 0
      %739 = vmatpush1.bf16.msra.mxu0 0
      %740 = vmatprep.subr.bf16.mxu0 0
      %741 = vmatpush1.bf16.msra.mxu0 0
      %742 = vmatprep.subr.bf16.mxu0 0
      %743 = vmatpush1.bf16.msra.mxu0 0
      %744 = vmatprep.subr.bf16.mxu0 0
      %745 = vmatpush1.bf16.msra.mxu0 0
      %746 = vmatprep.subr.bf16.mxu0 0
      %747 = vmatpush1.bf16.msra.mxu0 0
      %748 = vmatprep.subr.bf16.mxu0 0
      %749 = vmatpush1.bf16.msra.mxu0 0
      %750 = vmatprep.subr.bf16.mxu0 0
      %751 = vmatpush1.bf16.msra.mxu0 0
      %752 = vmatprep.subr.bf16.mxu0 0
      %753 = vmatpush1.bf16.msra.mxu0 0
      %754 = vmatprep.subr.bf16.mxu0 0
      %755 = vmatpush1.bf16.msra.mxu0 0
      %756 = vmatprep.mubr.bf16.mxu0 0
      %757 = vmatmul.mubr.bf16.gmra.mrb[0].mxu0 %v677
      %v758 = vpop.f32.mrb[0].mxu0
      %v759 = vadd.f32 %v649, %v758
      %v760 = vpop.f32.mrb[0].mxu0
      %v761 = vpop.f32.mrb[0].mxu0
      %v762 = vadd.f32 %v649, %v761
      %v763 = vpop.f32.mrb[0].mxu0
      %764 = vmatprep.mubr.bf16.mxu0 0
      %765 = vmatmul.mubr.bf16.gmra.mrb[0].mxu0 %v680
      %v766 = vpop.f32.mrb[0].mxu0
      %v767 = vadd.f32 %v649, %v766
      %v768 = vpop.f32.mrb[0].mxu0
      %v769 = vpop.f32.mrb[0].mxu0
      %v770 = vadd.f32 %v649, %v769
      %v771 = vpop.f32.mrb[0].mxu0
      %772 = vmatprep.mubr.bf16.mxu0 0
      %773 = vmatmul.mubr.bf16.gmra.mrb[0].mxu0 %v683
      %v774 = vpop.f32.mrb[0].mxu0
      %v775 = vadd.f32 %v649, %v774
      %v776 = vpop.f32.mrb[0].mxu0
      %v777 = vpop.f32.mrb[0].mxu0
      %v778 = vadd.f32 %v649, %v777
      %v779 = vpop.f32.mrb[0].mxu0
      %780 = vmatprep.mubr.bf16.mxu0 0
      %781 = vmatmul.mubr.bf16.gmra.mrb[0].mxu0 %v686
      %v782 = vpop.f32.mrb[0].mxu0
      %v783 = vadd.f32 %v649, %v782
      %v784 = vpop.f32.mrb[0].mxu0
      %v785 = vpop.f32.mrb[0].mxu0
      %v786 = vadd.f32 %v649, %v785
      %v787 = vpop.f32.mrb[0].mxu0
      %788 = vmatprep.mubr.bf16.mxu0 0
      %789 = vmatmul.mubr.bf16.gmra.mrb[0].mxu0 %v689
      %v790 = vpop.f32.mrb[0].mxu0
      %v791 = vadd.f32 %v649, %v790
      %v792 = vpop.f32.mrb[0].mxu0
      %v793 = vpop.f32.mrb[0].mxu0
      %v794 = vadd.f32 %v649, %v793
      %v795 = vpop.f32.mrb[0].mxu0
      %796 = vmatprep.mubr.bf16.mxu0 0
      %797 = vmatmul.mubr.bf16.gmra.mrb[0].mxu0 %v692
      %v798 = vpop.f32.mrb[0].mxu0
      %v799 = vadd.f32 %v649, %v798
      %v800 = vpop.f32.mrb[0].mxu0
      %v801 = vpop.f32.mrb[0].mxu0
      %v802 = vadd.f32 %v649, %v801
      %v803 = vpop.f32.mrb[0].mxu0
      %804 = vmatprep.mubr.bf16.mxu0 0
      %805 = vmatmul.mubr.bf16.gmra.mrb[0].mxu0 %v695
      %v806 = vpop.f32.mrb[0].mxu0
      %v807 = vadd.f32 %v649, %v806
      %v808 = vpop.f32.mrb[0].mxu0
      %v809 = vpop.f32.mrb[0].mxu0
      %v810 = vadd.f32 %v649, %v809
      %v811 = vpop.f32.mrb[0].mxu0
      %812 = vmatprep.mubr.bf16.mxu0 0
      %813 = vmatmul.mubr.bf16.gmra.mrb[0].mxu0 %v698
      %v814 = vpop.f32.mrb[0].mxu0
      %v815 = vadd.f32 %v649, %v814
      %v816 = vpop.f32.mrb[0].mxu0
      %v817 = vpop.f32.mrb[0].mxu0
      %v818 = vadd.f32 %v649, %v817
      %v819 = vpop.f32.mrb[0].mxu0
      %820 = vmatprep.mubr.bf16.mxu0 0
      %821 = vmatmul.mubr.bf16.gmra.mrb[0].mxu0 %v701
      %v822 = vpop.f32.mrb[0].mxu0
      %v823 = vadd.f32 %v649, %v822
      %v824 = vpop.f32.mrb[0].mxu0
      %v825 = vpop.f32.mrb[0].mxu0
      %v826 = vadd.f32 %v649, %v825
      %v827 = vpop.f32.mrb[0].mxu0
      %828 = vmatprep.mubr.bf16.mxu0 0
      %829 = vmatmul.mubr.bf16.gmra.mrb[0].mxu0 %v704
      %v830 = vpop.f32.mrb[0].mxu0
      %v831 = vadd.f32 %v649, %v830
      %v832 = vpop.f32.mrb[0].mxu0
      %v833 = vpop.f32.mrb[0].mxu0
      %v834 = vadd.f32 %v649, %v833
      %v835 = vpop.f32.mrb[0].mxu0
      %836 = vmatprep.mubr.bf16.mxu0 0
      %837 = vmatmul.mubr.bf16.gmra.mrb[0].mxu0 %v707
      %v838 = vpop.f32.mrb[0].mxu0
      %v839 = vadd.f32 %v649, %v838
      %v840 = vpop.f32.mrb[0].mxu0
      %v841 = vpop.f32.mrb[0].mxu0
      %v842 = vadd.f32 %v649, %v841
      %v843 = vpop.f32.mrb[0].mxu0
      %844 = vmatprep.mubr.bf16.mxu0 0
      %845 = vmatmul.mubr.bf16.gmra.mrb[0].mxu0 %v710
      %v846 = vpop.f32.mrb[0].mxu0
      %v847 = vadd.f32 %v649, %v846
      %v848 = vpop.f32.mrb[0].mxu0
      %v849 = vpop.f32.mrb[0].mxu0
      %v850 = vadd.f32 %v649, %v849
      %v851 = vpop.f32.mrb[0].mxu0
      %852 = vmatprep.mubr.bf16.mxu0 0
      %853 = vmatmul.mubr.bf16.gmra.mrb[0].mxu0 %v713
      %v854 = vpop.f32.mrb[0].mxu0
      %v855 = vadd.f32 %v649, %v854
      %v856 = vpop.f32.mrb[0].mxu0
      %v857 = vpop.f32.mrb[0].mxu0
      %v858 = vadd.f32 %v649, %v857
      %v859 = vpop.f32.mrb[0].mxu0
      %860 = vmatprep.mubr.bf16.mxu0 0
      %861 = vmatmul.mubr.bf16.gmra.mrb[0].mxu0 %v716
      %v862 = vpop.f32.mrb[0].mxu0
      %v863 = vadd.f32 %v649, %v862
      %v864 = vpop.f32.mrb[0].mxu0
      %v865 = vpop.f32.mrb[0].mxu0
      %v866 = vadd.f32 %v649, %v865
      %v867 = vpop.f32.mrb[0].mxu0
      %868 = vmatprep.mubr.bf16.mxu0 0
      %869 = vmatmul.mubr.bf16.gmra.mrb[0].mxu0 %v719
      %v870 = vpop.f32.mrb[0].mxu0
      %v871 = vadd.f32 %v649, %v870
      %v872 = vpop.f32.mrb[0].mxu0
      %v873 = vpop.f32.mrb[0].mxu0
      %v874 = vadd.f32 %v649, %v873
      %v875 = vpop.f32.mrb[0].mxu0
      %876 = vmatprep.mubr.bf16.mxu0 0
      %877 = vmatmul.mubr.bf16.gmra.mrb[0].mxu0 %v722
      %v878 = vpop.f32.mrb[0].mxu0
      %v879 = vadd.f32 %v649, %v878
      %v880 = vpop.f32.mrb[0].mxu0
      %v881 = vpop.f32.mrb[0].mxu0
      %v882 = vadd.f32 %v649, %v881
      %v883 = vpop.f32.mrb[0].mxu0
      %884 = vdwg.mxu0
      %v885 = vmul.f32 %v759, 0.1
      %v886 = vmul.f32 %v762, 0.1
      %v887 = vmul.f32 %v767, 0.1
      %v888 = vmul.f32 %v770, 0.1
      %v889 = vmul.f32 %v775, 0.1
      %v890 = vmul.f32 %v778, 0.1
      %v891 = vmul.f32 %v783, 0.1
      %v892 = vmul.f32 %v786, 0.1
      %v893 = vmul.f32 %v791, 0.1
      %v894 = vmul.f32 %v794, 0.1
      %v895 = vmul.f32 %v799, 0.1
      %v896 = vmul.f32 %v802, 0.1
      %v897 = vmul.f32 %v807, 0.1
      %v898 = vmul.f32 %v810, 0.1
      %v899 = vmul.f32 %v815, 0.1
      %v900 = vmul.f32 %v818, 0.1
      %v901 = vmul.f32 %v823, 0.1
      %v902 = vmul.f32 %v826, 0.1
      %v903 = vmul.f32 %v831, 0.1
      %v904 = vmul.f32 %v834, 0.1
      %v905 = vmul.f32 %v839, 0.1
      %v906 = vmul.f32 %v842, 0.1
      %v907 = vmul.f32 %v847, 0.1
      %v908 = vmul.f32 %v850, 0.1
      %v909 = vmul.f32 %v855, 0.1
      %v910 = vmul.f32 %v858, 0.1
      %v911 = vmul.f32 %v863, 0.1
      %v912 = vmul.f32 %v866, 0.1
      %v913 = vmul.f32 %v871, 0.1
      %v914 = vmul.f32 %v874, 0.1
      %v915 = vmul.f32 %v879, 0.1
      %v916 = vmul.f32 %v882, 0.1
      %v917 = vmax.f32 %v759, %v885
      %v918 = vmax.f32 %v762, %v886
      %v919 = vmax.f32 %v767, %v887
      %v920 = vmax.f32 %v770, %v888
      %v921 = vmax.f32 %v775, %v889
      %v922 = vmax.f32 %v778, %v890
      %v923 = vmax.f32 %v783, %v891
      %v924 = vmax.f32 %v786, %v892
      %v925 = vmax.f32 %v791, %v893
      %v926 = vmax.f32 %v794, %v894
      %v927 = vmax.f32 %v799, %v895
      %v928 = vmax.f32 %v802, %v896
      %v929 = vmax.f32 %v807, %v897
      %v930 = vmax.f32 %v810, %v898
      %v931 = vmax.f32 %v815, %v899
      %v932 = vmax.f32 %v818, %v900
      %v933 = vmax.f32 %v823, %v901
      %v934 = vmax.f32 %v826, %v902
      %v935 = vmax.f32 %v831, %v903
      %v936 = vmax.f32 %v834, %v904
      %v937 = vmax.f32 %v839, %v905
      %v938 = vmax.f32 %v842, %v906
      %v939 = vmax.f32 %v847, %v907
      %v940 = vmax.f32 %v850, %v908
      %v941 = vmax.f32 %v855, %v909
      %v942 = vmax.f32 %v858, %v910
      %v943 = vmax.f32 %v863, %v911
      %v944 = vmax.f32 %v866, %v912
      %v945 = vmax.f32 %v871, %v913
      %v946 = vmax.f32 %v874, %v914
      %v947 = vmax.f32 %v879, %v915
      %v948 = vmax.f32 %v882, %v916
      %v949 = vpack.c.bf16 %v918, %v917
      %v950 = vpack.c.bf16 %v920, %v919
      %v951 = vpack.c.bf16 %v922, %v921
      %v952 = vpack.c.bf16 %v924, %v923
      %v953 = vpack.c.bf16 %v926, %v925
      %v954 = vpack.c.bf16 %v928, %v927
      %v955 = vpack.c.bf16 %v930, %v929
      %v956 = vpack.c.bf16 %v932, %v931
      %v957 = vpack.c.bf16 %v934, %v933
      %v958 = vpack.c.bf16 %v936, %v935
      %v959 = vpack.c.bf16 %v938, %v937
      %v960 = vpack.c.bf16 %v940, %v939
      %v961 = vpack.c.bf16 %v942, %v941
      %v962 = vpack.c.bf16 %v944, %v943
      %v963 = vpack.c.bf16 %v946, %v945
      %v964 = vpack.c.bf16 %v948, %v947
      %v965 = vld [vmem:[%s3] sm:$0xf]
      %v966 = vld [vmem:[%s3 + $0x4] sm:$0xf]
      %v967 = vld [vmem:[%s3 + $0x8] sm:$0xf]
      %v968 = vld [vmem:[%s3 + $0xc] sm:$0xf]
      %v969 = vld [vmem:[%s3 + $0x10] sm:$0xf]
      %v970 = vld [vmem:[%s3 + $0x14] sm:$0xf]
      %v971 = vld [vmem:[%s3 + $0x18] sm:$0xf]
      %v972 = vld [vmem:[%s3 + $0x1c] sm:$0xf]
      %v973 = vld [vmem:[%s6] sm:$0x1]
      %v975 = vlaneseq
      %v976 = vshrl.u32 %v975, 7
      %v977 = vsub.s32 0, %v976
      %v978 = vrot.slane %v973, %v977
      %v988 = vunpack.c.l.b16 %v965
      %v989 = vunpack.c.l.b16 %v966
      %v990 = vunpack.c.l.b16 %v967
      %v991 = vunpack.c.l.b16 %v968
      %v992 = vunpack.c.l.b16 %v969
      %v993 = vunpack.c.l.b16 %v970
      %v994 = vunpack.c.l.b16 %v971
      %v995 = vunpack.c.l.b16 %v972
      %v996 = vpack.c.b16 %v989, %v988
      %v997 = vpack.c.b16 %v991, %v990
      %v998 = vpack.c.b16 %v993, %v992
      %v999 = vpack.c.b16 %v995, %v994
      %v1005 = vsel %vm675, %v949, 0
      %v1008 = vsel %vm675, %v950, 0
      %v1011 = vsel %vm675, %v951, 0
      %v1014 = vsel %vm675, %v952, 0
      %v1017 = vsel %vm675, %v953, 0
      %v1020 = vsel %vm675, %v954, 0
      %v1023 = vsel %vm675, %v955, 0
      %v1026 = vsel %vm675, %v956, 0
      %v1029 = vsel %vm675, %v957, 0
      %v1032 = vsel %vm675, %v958, 0
      %v1035 = vsel %vm675, %v959, 0
      %v1038 = vsel %vm675, %v960, 0
      %v1041 = vsel %vm675, %v961, 0
      %v1044 = vsel %vm675, %v962, 0
      %v1047 = vsel %vm675, %v963, 0
      %v1050 = vsel %vm675, %v964, 0
      %1052 = vmatprep.subr.bf16.mxu0 0
      %1053 = vmatpush1.bf16.msra.mxu0 %v996
      %1054 = vmatprep.subr.bf16.mxu0 0
      %1055 = vmatpush1.bf16.msra.mxu0 %v997
      %1056 = vmatprep.subr.bf16.mxu0 0
      %1057 = vmatpush1.bf16.msra.mxu0 %v998
      %1058 = vmatprep.subr.bf16.mxu0 0
      %1059 = vmatpush1.bf16.msra.mxu0 %v999
      %1060 = vmatprep.subr.bf16.mxu0 0
      %1061 = vmatpush1.bf16.msra.mxu0 0
      %1062 = vmatprep.subr.bf16.mxu0 0
      %1063 = vmatpush1.bf16.msra.mxu0 0
      %1064 = vmatprep.subr.bf16.mxu0 0
      %1065 = vmatpush1.bf16.msra.mxu0 0
      %1066 = vmatprep.subr.bf16.mxu0 0
      %1067 = vmatpush1.bf16.msra.mxu0 0
      %1068 = vmatprep.subr.bf16.mxu0 0
      %1069 = vmatpush1.bf16.msra.mxu0 0
      %1070 = vmatprep.subr.bf16.mxu0 0
      %1071 = vmatpush1.bf16.msra.mxu0 0
      %1072 = vmatprep.subr.bf16.mxu0 0
      %1073 = vmatpush1.bf16.msra.mxu0 0
      %1074 = vmatprep.subr.bf16.mxu0 0
      %1075 = vmatpush1.bf16.msra.mxu0 0
      %1076 = vmatprep.subr.bf16.mxu0 0
      %1077 = vmatpush1.bf16.msra.mxu0 0
      %1078 = vmatprep.subr.bf16.mxu0 0
      %1079 = vmatpush1.bf16.msra.mxu0 0
      %1080 = vmatprep.subr.bf16.mxu0 0
      %1081 = vmatpush1.bf16.msra.mxu0 0
      %1082 = vmatprep.subr.bf16.mxu0 0
      %1083 = vmatpush1.bf16.msra.mxu0 0
      %1084 = vmatprep.mubr.bf16.mxu0 0
      %1085 = vmatmul.mubr.bf16.gmra.mrb[0].mxu0 %v1005
      %v1086 = vpop.f32.mrb[0].mxu0
      %v1087 = vadd.f32 %v978, %v1086
      %v1088 = vpop.f32.mrb[0].mxu0
      %v1089 = vpop.f32.mrb[0].mxu0
      %v1090 = vadd.f32 %v978, %v1089
      %v1091 = vpop.f32.mrb[0].mxu0
      %1092 = vmatprep.mubr.bf16.mxu0 0
      %1093 = vmatmul.mubr.bf16.gmra.mrb[0].mxu0 %v1008
      %v1094 = vpop.f32.mrb[0].mxu0
      %v1095 = vadd.f32 %v978, %v1094
      %v1096 = vpop.f32.mrb[0].mxu0
      %v1097 = vpop.f32.mrb[0].mxu0
      %v1098 = vadd.f32 %v978, %v1097
      %v1099 = vpop.f32.mrb[0].mxu0
      %1100 = vmatprep.mubr.bf16.mxu0 0
      %1101 = vmatmul.mubr.bf16.gmra.mrb[0].mxu0 %v1011
      %v1102 = vpop.f32.mrb[0].mxu0
      %v1103 = vadd.f32 %v978, %v1102
      %v1104 = vpop.f32.mrb[0].mxu0
      %v1105 = vpop.f32.mrb[0].mxu0
      %v1106 = vadd.f32 %v978, %v1105
      %v1107 = vpop.f32.mrb[0].mxu0
      %1108 = vmatprep.mubr.bf16.mxu0 0
      %1109 = vmatmul.mubr.bf16.gmra.mrb[0].mxu0 %v1014
      %v1110 = vpop.f32.mrb[0].mxu0
      %v1111 = vadd.f32 %v978, %v1110
      %v1112 = vpop.f32.mrb[0].mxu0
      %v1113 = vpop.f32.mrb[0].mxu0
      %v1114 = vadd.f32 %v978, %v1113
      %v1115 = vpop.f32.mrb[0].mxu0
      %1116 = vmatprep.mubr.bf16.mxu0 0
      %1117 = vmatmul.mubr.bf16.gmra.mrb[0].mxu0 %v1017
      %v1118 = vpop.f32.mrb[0].mxu0
      %v1119 = vadd.f32 %v978, %v1118
      %v1120 = vpop.f32.mrb[0].mxu0
      %v1121 = vpop.f32.mrb[0].mxu0
      %v1122 = vadd.f32 %v978, %v1121
      %v1123 = vpop.f32.mrb[0].mxu0
      %1124 = vmatprep.mubr.bf16.mxu0 0
      %1125 = vmatmul.mubr.bf16.gmra.mrb[0].mxu0 %v1020
      %v1126 = vpop.f32.mrb[0].mxu0
      %v1127 = vadd.f32 %v978, %v1126
      %v1128 = vpop.f32.mrb[0].mxu0
      %v1129 = vpop.f32.mrb[0].mxu0
      %v1130 = vadd.f32 %v978, %v1129
      %v1131 = vpop.f32.mrb[0].mxu0
      %1132 = vmatprep.mubr.bf16.mxu0 0
      %1133 = vmatmul.mubr.bf16.gmra.mrb[0].mxu0 %v1023
      %v1134 = vpop.f32.mrb[0].mxu0
      %v1135 = vadd.f32 %v978, %v1134
      %v1136 = vpop.f32.mrb[0].mxu0
      %v1137 = vpop.f32.mrb[0].mxu0
      %v1138 = vadd.f32 %v978, %v1137
      %v1139 = vpop.f32.mrb[0].mxu0
      %1140 = vmatprep.mubr.bf16.mxu0 0
      %1141 = vmatmul.mubr.bf16.gmra.mrb[0].mxu0 %v1026
      %v1142 = vpop.f32.mrb[0].mxu0
      %v1143 = vadd.f32 %v978, %v1142
      %v1144 = vpop.f32.mrb[0].mxu0
      %v1145 = vpop.f32.mrb[0].mxu0
      %v1146 = vadd.f32 %v978, %v1145
      %v1147 = vpop.f32.mrb[0].mxu0
      %1148 = vmatprep.mubr.bf16.mxu0 0
      %1149 = vmatmul.mubr.bf16.gmra.mrb[0].mxu0 %v1029
      %v1150 = vpop.f32.mrb[0].mxu0
      %v1151 = vadd.f32 %v978, %v1150
      %v1152 = vpop.f32.mrb[0].mxu0
      %v1153 = vpop.f32.mrb[0].mxu0
      %v1154 = vadd.f32 %v978, %v1153
      %v1155 = vpop.f32.mrb[0].mxu0
      %1156 = vmatprep.mubr.bf16.mxu0 0
      %1157 = vmatmul.mubr.bf16.gmra.mrb[0].mxu0 %v1032
      %v1158 = vpop.f32.mrb[0].mxu0
      %v1159 = vadd.f32 %v978, %v1158
      %v1160 = vpop.f32.mrb[0].mxu0
      %v1161 = vpop.f32.mrb[0].mxu0
      %v1162 = vadd.f32 %v978, %v1161
      %v1163 = vpop.f32.mrb[0].mxu0
      %1164 = vmatprep.mubr.bf16.mxu0 0
      %1165 = vmatmul.mubr.bf16.gmra.mrb[0].mxu0 %v1035
      %v1166 = vpop.f32.mrb[0].mxu0
      %v1167 = vadd.f32 %v978, %v1166
      %v1168 = vpop.f32.mrb[0].mxu0
      %v1169 = vpop.f32.mrb[0].mxu0
      %v1170 = vadd.f32 %v978, %v1169
      %v1171 = vpop.f32.mrb[0].mxu0
      %1172 = vmatprep.mubr.bf16.mxu0 0
      %1173 = vmatmul.mubr.bf16.gmra.mrb[0].mxu0 %v1038
      %v1174 = vpop.f32.mrb[0].mxu0
      %v1175 = vadd.f32 %v978, %v1174
      %v1176 = vpop.f32.mrb[0].mxu0
      %v1177 = vpop.f32.mrb[0].mxu0
      %v1178 = vadd.f32 %v978, %v1177
      %v1179 = vpop.f32.mrb[0].mxu0
      %1180 = vmatprep.mubr.bf16.mxu0 0
      %1181 = vmatmul.mubr.bf16.gmra.mrb[0].mxu0 %v1041
      %v1182 = vpop.f32.mrb[0].mxu0
      %v1183 = vadd.f32 %v978, %v1182
      %v1184 = vpop.f32.mrb[0].mxu0
      %v1185 = vpop.f32.mrb[0].mxu0
      %v1186 = vadd.f32 %v978, %v1185
      %v1187 = vpop.f32.mrb[0].mxu0
      %1188 = vmatprep.mubr.bf16.mxu0 0
      %1189 = vmatmul.mubr.bf16.gmra.mrb[0].mxu0 %v1044
      %v1190 = vpop.f32.mrb[0].mxu0
      %v1191 = vadd.f32 %v978, %v1190
      %v1192 = vpop.f32.mrb[0].mxu0
      %v1193 = vpop.f32.mrb[0].mxu0
      %v1194 = vadd.f32 %v978, %v1193
      %v1195 = vpop.f32.mrb[0].mxu0
      %1196 = vmatprep.mubr.bf16.mxu0 0
      %1197 = vmatmul.mubr.bf16.gmra.mrb[0].mxu0 %v1047
      %v1198 = vpop.f32.mrb[0].mxu0
      %v1199 = vadd.f32 %v978, %v1198
      %v1200 = vpop.f32.mrb[0].mxu0
      %v1201 = vpop.f32.mrb[0].mxu0
      %v1202 = vadd.f32 %v978, %v1201
      %v1203 = vpop.f32.mrb[0].mxu0
      %1204 = vmatprep.mubr.bf16.mxu0 0
      %1205 = vmatmul.mubr.bf16.gmra.mrb[0].mxu0 %v1050
      %v1206 = vpop.f32.mrb[0].mxu0
      %v1207 = vadd.f32 %v978, %v1206
      %v1208 = vpop.f32.mrb[0].mxu0
      %v1209 = vpop.f32.mrb[0].mxu0
      %v1210 = vadd.f32 %v978, %v1209
      %v1211 = vpop.f32.mrb[0].mxu0
      %1212 = vdwg.mxu0
      %v1213 = vlaneseq
      %v1214 = vand.u32 %v1213, 127
      %vm1215 = vcmp.lt.s32.totalorder %v1214, 16
      %v1216 = vmul.f32 %v1087, 1.442695
      %v1217 = vpow.pop %v1216
      %v1218 = vmul.f32 %v1090, 1.442695
      %v1219 = vpow.pop %v1218
      %v1220 = vmul.f32 %v1095, 1.442695
      %v1221 = vpow.pop %v1220
      %v1222 = vmul.f32 %v1098, 1.442695
      %v1223 = vpow.pop %v1222
      %v1224 = vmul.f32 %v1103, 1.442695
      %v1225 = vpow.pop %v1224
      %v1226 = vmul.f32 %v1106, 1.442695
      %v1227 = vpow.pop %v1226
      %v1228 = vmul.f32 %v1111, 1.442695
      %v1229 = vpow.pop %v1228
      %v1230 = vmul.f32 %v1114, 1.442695
      %v1231 = vpow.pop %v1230
      %v1232 = vmul.f32 %v1119, 1.442695
      %v1233 = vpow.pop %v1232
      %v1234 = vmul.f32 %v1122, 1.442695
      %v1235 = vpow.pop %v1234
      %v1236 = vmul.f32 %v1127, 1.442695
      %v1237 = vpow.pop %v1236
      %v1238 = vmul.f32 %v1130, 1.442695
      %v1239 = vpow.pop %v1238
      %v1240 = vmul.f32 %v1135, 1.442695
      %v1241 = vpow.pop %v1240
      %v1242 = vmul.f32 %v1138, 1.442695
      %v1243 = vpow.pop %v1242
      %v1244 = vmul.f32 %v1143, 1.442695
      %v1245 = vpow.pop %v1244
      %v1246 = vmul.f32 %v1146, 1.442695
      %v1247 = vpow.pop %v1246
      %v1248 = vmul.f32 %v1151, 1.442695
      %v1249 = vpow.pop %v1248
      %v1250 = vmul.f32 %v1154, 1.442695
      %v1251 = vpow.pop %v1250
      %v1252 = vmul.f32 %v1159, 1.442695
      %v1253 = vpow.pop %v1252
      %v1254 = vmul.f32 %v1162, 1.442695
      %v1255 = vpow.pop %v1254
      %v1256 = vmul.f32 %v1167, 1.442695
      %v1257 = vpow.pop %v1256
      %v1258 = vmul.f32 %v1170, 1.442695
      %v1259 = vpow.pop %v1258
      %v1260 = vmul.f32 %v1175, 1.442695
      %v1261 = vpow.pop %v1260
      %v1262 = vmul.f32 %v1178, 1.442695
      %v1263 = vpow.pop %v1262
      %v1264 = vmul.f32 %v1183, 1.442695
      %v1265 = vpow.pop %v1264
      %v1266 = vmul.f32 %v1186, 1.442695
      %v1267 = vpow.pop %v1266
      %v1268 = vmul.f32 %v1191, 1.442695
      %v1269 = vpow.pop %v1268
      %v1270 = vmul.f32 %v1194, 1.442695
      %v1271 = vpow.pop %v1270
      %v1272 = vmul.f32 %v1199, 1.442695
      %v1273 = vpow.pop %v1272
      %v1274 = vmul.f32 %v1202, 1.442695
      %v1275 = vpow.pop %v1274
      %v1276 = vmul.f32 %v1207, 1.442695
      %v1277 = vpow.pop %v1276
      %v1278 = vmul.f32 %v1210, 1.442695
      %v1279 = vpow.pop %v1278
      %v1280 = vsel %vm1215, 1, 0
      %vm1281 = vcmp.eq.s32.totalorder %v1280, 1
      %v1282 = vsel %vm1281, %v1087, %v1217
      %v1283 = vsel %vm1281, %v1090, %v1219
      %v1284 = vsel %vm1281, %v1095, %v1221
      %v1285 = vsel %vm1281, %v1098, %v1223
      %v1286 = vsel %vm1281, %v1103, %v1225
      %v1287 = vsel %vm1281, %v1106, %v1227
      %v1288 = vsel %vm1281, %v1111, %v1229
      %v1289 = vsel %vm1281, %v1114, %v1231
      %v1290 = vsel %vm1281, %v1119, %v1233
      %v1291 = vsel %vm1281, %v1122, %v1235
      %v1292 = vsel %vm1281, %v1127, %v1237
      %v1293 = vsel %vm1281, %v1130, %v1239
      %v1294 = vsel %vm1281, %v1135, %v1241
      %v1295 = vsel %vm1281, %v1138, %v1243
      %v1296 = vsel %vm1281, %v1143, %v1245
      %v1297 = vsel %vm1281, %v1146, %v1247
      %v1298 = vsel %vm1281, %v1151, %v1249
      %v1299 = vsel %vm1281, %v1154, %v1251
      %v1300 = vsel %vm1281, %v1159, %v1253
      %v1301 = vsel %vm1281, %v1162, %v1255
      %v1302 = vsel %vm1281, %v1167, %v1257
      %v1303 = vsel %vm1281, %v1170, %v1259
      %v1304 = vsel %vm1281, %v1175, %v1261
      %v1305 = vsel %vm1281, %v1178, %v1263
      %v1306 = vsel %vm1281, %v1183, %v1265
      %v1307 = vsel %vm1281, %v1186, %v1267
      %v1308 = vsel %vm1281, %v1191, %v1269
      %v1309 = vsel %vm1281, %v1194, %v1271
      %v1310 = vsel %vm1281, %v1199, %v1273
      %v1311 = vsel %vm1281, %v1202, %v1275
      %v1312 = vsel %vm1281, %v1207, %v1277
      %v1313 = vsel %vm1281, %v1210, %v1279
      %vm1314 = vcmask 261120
      %1315 = vst.msk [vmem:[%s280] sm:$0xff] %vm1314, %v1282
      %1316 = vst.msk [vmem:[%s280 + $0x8] sm:$0xff] %vm1314, %v1283
      %1317 = vst.msk [vmem:[%s280 + $0x10] sm:$0xff] %vm1314, %v1284
      %1318 = vst.msk [vmem:[%s280 + $0x18] sm:$0xff] %vm1314, %v1285
      %1319 = vst.msk [vmem:[%s280 + $0x20] sm:$0xff] %vm1314, %v1286
      %1320 = vst.msk [vmem:[%s280 + $0x28] sm:$0xff] %vm1314, %v1287
      %1321 = vst.msk [vmem:[%s280 + $0x30] sm:$0xff] %vm1314, %v1288
      %1322 = vst.msk [vmem:[%s280 + $0x38] sm:$0xff] %vm1314, %v1289
      %1323 = vst.msk [vmem:[%s280 + $0x40] sm:$0xff] %vm1314, %v1290
      %1324 = vst.msk [vmem:[%s280 + $0x48] sm:$0xff] %vm1314, %v1291
      %1325 = vst.msk [vmem:[%s280 + $0x50] sm:$0xff] %vm1314, %v1292
      %1326 = vst.msk [vmem:[%s280 + $0x58] sm:$0xff] %vm1314, %v1293
      %1327 = vst.msk [vmem:[%s280 + $0x60] sm:$0xff] %vm1314, %v1294
      %1328 = vst.msk [vmem:[%s280 + $0x68] sm:$0xff] %vm1314, %v1295
      %1329 = vst.msk [vmem:[%s280 + $0x70] sm:$0xff] %vm1314, %v1296
      %1330 = vst.msk [vmem:[%s280 + $0x78] sm:$0xff] %vm1314, %v1297
      %1331 = vst.msk [vmem:[%s280 + $0x80] sm:$0xff] %vm1314, %v1298
      %1332 = vst.msk [vmem:[%s280 + $0x88] sm:$0xff] %vm1314, %v1299
      %1333 = vst.msk [vmem:[%s280 + $0x90] sm:$0xff] %vm1314, %v1300
      %1334 = vst.msk [vmem:[%s280 + $0x98] sm:$0xff] %vm1314, %v1301
      %1335 = vst.msk [vmem:[%s280 + $0xa0] sm:$0xff] %vm1314, %v1302
      %1336 = vst.msk [vmem:[%s280 + $0xa8] sm:$0xff] %vm1314, %v1303
      %1337 = vst.msk [vmem:[%s280 + $0xb0] sm:$0xff] %vm1314, %v1304
      %1338 = vst.msk [vmem:[%s280 + $0xb8] sm:$0xff] %vm1314, %v1305
      %1339 = vst.msk [vmem:[%s280 + $0xc0] sm:$0xff] %vm1314, %v1306
      %1340 = vst.msk [vmem:[%s280 + $0xc8] sm:$0xff] %vm1314, %v1307
      %1341 = vst.msk [vmem:[%s280 + $0xd0] sm:$0xff] %vm1314, %v1308
      %1342 = vst.msk [vmem:[%s280 + $0xd8] sm:$0xff] %vm1314, %v1309
      %1343 = vst.msk [vmem:[%s280 + $0xe0] sm:$0xff] %vm1314, %v1310
      %1344 = vst.msk [vmem:[%s280 + $0xe8] sm:$0xff] %vm1314, %v1311
      %1345 = vst.msk [vmem:[%s280 + $0xf0] sm:$0xff] %vm1314, %v1312
      %1346 = vst.msk [vmem:[%s280 + $0xf8] sm:$0xff] %vm1314, %v1313
      %s1347 = smul.u32 32, %s18
      %p1348 = scmp.lt.s32.totalorder %s1347, 63
      %s1349 = scalar_select %p1348, %s1347, 63
      %s1350 = smul.addr %s1349, 8
      %s1351 = scalar_lea.vmem %s7, %s1350
      // Predicated region
      $region49: #{tpu_custom_call.1} parent=47 // pred_check
        %p1352 = pneg %p188
      $region50: #{tpu_custom_call.1} parent=47 // pred_check_branch
        %1354 = sbr.rel (%p1352) target = $region52
      $region51: #{tpu_custom_call.1} parent=47 // pred_region
        %s1355 = smul.u32 32, %s18
      $region52: #{tpu_custom_call.1} parent=47 // pred_fallthru
        _
    $region48: #{tpu_custom_call.1} parent=5 // pred_fallthru
      _
    %p1356 = scmp.le.s32.totalorder 2, %s13
    // Predicated region
    $region53: #{tpu_custom_call.1} parent=5 // pred_check
      %p1357 = pneg %p1356
    $region54: #{tpu_custom_call.1} parent=5 // pred_check_branch
      %1359 = sbr.rel (%p1357) target = $region56
    $region55: #{tpu_custom_call.1} parent=5 // pred_region
      %s1360 = ssub.s32 %s13, 2
      // Predicated region
      $region57: #{tpu_custom_call.1} parent=55 // pred_check
        %p1361 = pneg %p194
      $region58: #{tpu_custom_call.1} parent=55 // pred_check_branch
        %1363 = sbr.rel (%p1361) target = $region60
      $region59: #{tpu_custom_call.1} parent=55 // pred_region
        %s1364 = smul.u32 32, %s19
        %p1365 = scmp.lt.s32.totalorder %s1364, 63
        %s1366 = scalar_select %p1365, %s1364, 63
        %s1367 = smul.addr %s1366, 8
        %s1368 = scalar_lea.vmem %s7, %s1367
      $region60: #{tpu_custom_call.1} parent=55 // pred_fallthru
        _
    $region56: #{tpu_custom_call.1} parent=5 // pred_fallthru
      _
  $region6: #{tpu_custom_call.1} parent=0 // loop_footer
    %s17 = sadd.s32 1, %s13
  $region7: #{tpu_custom_call.1} parent=0 // loop_footer_branch
    %12 = sbr.rel target = $region3
  $region8: #{tpu_custom_call.1} parent=0 // loop_exit
    _

</llo_original>
